<compile_context>
chip_gen: v7x
topology: tpu7x:2x2x1
jax: 0.10.0
libtpu: 0.0.40
codegen_flags: <defaults>
</compile_context>

<pallas_src>
import math
from functools import partial

import jax
import jax.numpy as jnp
from jax.experimental import pallas as pl
from jax.experimental.pallas import tpu as pltpu


def _llora_kernel(x_ref, wd_ref, bd_ref, wu_ref, bu_ref, o_ref, *, chunk):
    # x_ref:  [tm, D]    wd_ref: [D, Rp]    bd_ref: [1, Rp] (f32)
    # wu_ref: [Rp, tn]   bu_ref: [1, tn] (f32)               o_ref: [tm, tn]
    h = jnp.dot(x_ref[...], wd_ref[...], preferred_element_type=jnp.float32)
    # Bias add in f32, then back to the weight dtype so the second matmul keeps
    # the MXU fed with bf16 for bf16 params (no-op for f32 params).
    # NOTE: for bf16 params this loses mantissa vs an all-f32 intermediate
    # (standard practice; tolerance-tested).
    h = (h + bd_ref[...]).astype(wu_ref.dtype)

    n = o_ref.shape[-1]
    # Chunk the second matmul over output columns to cap the live f32 slab at
    # tm*chunk*4 bytes (matters inside v7x's 64 MiB VMEM).  Static, 128-aligned
    # slices only.
    for c0 in range(0, n, chunk):
        c1 = min(c0 + chunk, n)
        y = jnp.dot(h, wu_ref[:, c0:c1], preferred_element_type=jnp.float32)
        y = y + bu_ref[:, c0:c1]
        o_ref[:, c0:c1] = y.astype(o_ref.dtype)


def _vmem_budget_bytes():
    """Generation-aware VMEM budget: physical capacity minus fixed headroom."""
    try:
        cap = int(pltpu.get_tpu_info().vmem_capacity_bytes)
    except Exception:
        cap = 64 * 1024 * 1024  # conservative fallback: fits every generation
    return cap - max(8 << 20, cap // 8)  # v6e/v5e: ~112 MiB, v7x: ~56 MiB


def prepare_llora_params(wd, bd, wu, bu):
    """One-time packing of the module parameters for the kernel.

    Pads the rank axis to a 128-lane multiple (exact: padded h columns hit
    zero Wu rows) and keeps the biases resident as f32 row vectors.  Do this
    once at init/caching time, NOT per forward call.
    """
    D, R = wd.shape
    Rp = max(128, ((R + 127) // 128) * 128)
    if Rp != R:
        wd = jnp.pad(wd, ((0, 0), (0, Rp - R)))
        bd = jnp.pad(bd, ((0, Rp - R),))
        wu = jnp.pad(wu, ((0, Rp - R), (0, 0)))
    bd2 = bd.reshape(1, Rp).astype(jnp.float32)
    bu2 = bu.reshape(1, D).astype(jnp.float32)
    return wd, bd2, wu, bu2


def llora_forward(x, params, *, block_m=None):
    """x: [..., D].  params: output of prepare_llora_params."""
    wd, bd2, wu, bu2 = params
    D, Rp = wd.shape
    assert x.shape[-1] == D, "last dim of x must equal initial_dim"
    # NOTE: D that is not a multiple of 128 lowers to masked partial stores
    # (correct but slower); realistic hidden sizes are lane-dense.

    orig_shape = x.shape
    x2d = x.reshape(-1, D)
    M = x2d.shape[0]

    dtype = x.dtype
    itemsize = jnp.dtype(dtype).itemsize
    w_itemsize = jnp.dtype(wd.dtype).itemsize
    sublane = 8 if itemsize >= 4 else (16 if itemsize == 2 else 32)

    budget = _vmem_budget_bytes()

    # ---- choose tm: largest M tile whose full footprint (double-buffered
    #      x/out tiles + resident weights/biases + f32 intermediates) fits ----
    if block_m is None:
        chunk_guess = min(((D + 127) // 128) * 128, 1024)
        fixed = (2 * 2 * D * Rp * w_itemsize      # Wd + Wu (worst case 2 buffers)
                 + 2 * (Rp + D) * 4                # biases (f32)
                 + (2 << 20))                      # slack for Mosaic scratch
        per_row = (2 * D * itemsize                # x tile, double-buffered
                   + 2 * D * itemsize              # out tile, double-buffered
                   + Rp * 4                        # h intermediate (f32)
                   + chunk_guess * 4)              # y chunk (f32)
        tm = max(sublane, (budget - fixed) // per_row)
        tm = max(sublane, min(2048, (tm // sublane) * sublane))
    else:
        tm = block_m
    tm = min(tm, ((M + sublane - 1) // sublane) * sublane)
    tm = max(tm, sublane)
    m_steps = -(-M // tm)

    # ---- N tiling only when the M grid has a single step (decode-style), so
    #      v7x's second TensorCore still gets work.  For m_steps >= 2 keep the
    #      full D as one block (avoids recomputing the first matmul per N tile;
    #      the in-kernel column chunking caps the f32 temporary instead). ----
    if m_steps == 1 and D % 128 == 0 and D >= 1024:
        n_steps = min(4, D // 512)
        tn = ((-(-D // n_steps) + 127) // 128) * 128
        n_steps = -(-D // tn)
    else:
        tn = D
        n_steps = 1

    # ---- in-kernel chunk width for the second matmul (f32 temp <= ~4 MiB) ----
    if tn % 128 == 0 and tn > 1024:
        cn = (min(2048, max(512, (4 << 20) // (tm * 4))) // 128) * 128
        cn = min(cn, tn)
    else:
        cn = tn

    wu_bu_const = (n_steps == 1)

    def run(single_buffer_consts: bool):
        def spec(shape, index_map, const):
            if single_buffer_consts and const:
                # constant index map -> second pipeline buffer is pure waste
                return pl.BlockSpec(shape, index_map, pipeline_mode=pl.Buffered(1))
            return pl.BlockSpec(shape, index_map)

        grid_spec = pl.GridSpec(
            grid=(m_steps, n_steps),
            in_specs=[
                pl.BlockSpec((tm, D), lambda i, j: (i, 0)),        # x: tiled along M
                spec((D, Rp), lambda i, j: (0, 0), True),          # Wd: resident
                spec((1, Rp), lambda i, j: (0, 0), True),          # bd: resident (f32)
                spec((Rp, tn), lambda i, j: (0, j), wu_bu_const),  # Wu
                spec((1, tn), lambda i, j: (0, j), wu_bu_const),   # bu (f32)
            ],
            out_specs=pl.BlockSpec((tm, tn), lambda i, j: (i, j)),
        )
        return pl.pallas_call(
            partial(_llora_kernel, chunk=cn),
            out_shape=jax.ShapeDtypeStruct((M, D), dtype),
            grid_spec=grid_spec,
            compiler_params=pltpu.CompilerParams(
                dimension_semantics=("parallel", "parallel"),  # megacore on v7x
                vmem_limit_bytes=int(budget),
            ),
        )(x2d, wd, bd2, wu, bu2)

    try:
        out = run(True)
    except Exception:
        # pipeline_mode=pl.Buffered(1) not supported by this JAX -> fall back
        # to default double-buffering of the resident weights/biases.
        out = run(False)

    return out.reshape(orig_shape)


def init_llora_params(key, initial_dim, rank, dtype=jnp.float32):
    """Deterministic init mimicking nn.Linear (uniform +/- 1/sqrt(fan_in)).

    Stored as (in, out) so the kernel does x @ W directly."""
    k1, k2, k3, k4 = jax.random.split(key, 4)
    bound_d = 1.0 / math.sqrt(initial_dim)
    bound_u = 1.0 / math.sqrt(rank)
    wd = jax.random.uniform(k1, (initial_dim, rank), dtype, -bound_d, bound_d)
    bd = jax.random.uniform(k2, (rank,), dtype, -bound_d, bound_d)
    wu = jax.random.uniform(k3, (rank, initial_dim), dtype, -bound_u, bound_u)
    bu = jax.random.uniform(k4, (initial_dim,), dtype, -bound_u, bound_u)
    return wd, bd, wu, bu


if __name__ == "__main__":
    batch, seq, hidden, rank = 2, 8, 32, 8

    key = jax.random.PRNGKey(0)
    kx, kp = jax.random.split(key)
    x = jax.random.normal(kx, (batch, seq, hidden), jnp.float32)
    wd, bd, wu, bu = init_llora_params(kp, hidden, rank)

    # one-time parameter packing (rank padded to 128 lanes, f32 biases)
    params = prepare_llora_params(wd, bd, wu, bu)

    y = llora_forward(x, params)
    y = jax.block_until_ready(y)

    # pure-JAX reference: LloraModule forward is downscale -> upscale (no activation)
    y_ref = (x @ wd + bd) @ wu + bu
    assert y.shape == x.shape
    assert jnp.allclose(y, y_ref, atol=1e-4, rtol=1e-4)

    print("KERNEL_OK")
</pallas_src>

<mosaic_0001>
module attributes {stable_mosaic.version = 11 : i64} {
  func.func @_llora_kernel(%arg0: i32, %arg1: i32, %arg2: memref<16x32xf32, #tpu.memory_space<vmem>>, %arg3: memref<32x128xf32, #tpu.memory_space<vmem>>, %arg4: memref<1x128xf32, #tpu.memory_space<vmem>>, %arg5: memref<128x32xf32, #tpu.memory_space<vmem>>, %arg6: memref<1x32xf32, #tpu.memory_space<vmem>>, %arg7: memref<16x32xf32, #tpu.memory_space<vmem>>) attributes {dimension_semantics = [#tpu.dimension_semantics<parallel>, #tpu.dimension_semantics<parallel>], iteration_bounds = array<i64: 1, 1>, scalar_prefetch = 0 : i64, scratch_operands = 0 : i64, tpu.core_type = #tpu.core_type<tc>, window_params = [{transform_indices = @transform_0, window_bounds = array<i64: 16, 32>}, {pipeline_mode = #tpu.pipeline_mode<synchronous>, transform_indices = @transform_1, window_bounds = array<i64: 32, 128>}, {pipeline_mode = #tpu.pipeline_mode<synchronous>, transform_indices = @transform_2, window_bounds = array<i64: 1, 128>}, {pipeline_mode = #tpu.pipeline_mode<synchronous>, transform_indices = @transform_3, window_bounds = array<i64: 128, 32>}, {pipeline_mode = #tpu.pipeline_mode<synchronous>, transform_indices = @transform_4, window_bounds = array<i64: 1, 32>}, {transform_indices = @transform_5, window_bounds = array<i64: 16, 32>}]} {
    %c0 = arith.constant 0 : index
    %c0_0 = arith.constant 0 : index
    %0 = vector.load %arg2[%c0, %c0_0] : memref<16x32xf32, #tpu.memory_space<vmem>>, vector<16x32xf32>
    %c0_1 = arith.constant 0 : index
    %c0_2 = arith.constant 0 : index
    %1 = vector.load %arg3[%c0_1, %c0_2] : memref<32x128xf32, #tpu.memory_space<vmem>>, vector<32x128xf32>
    %cst = arith.constant dense<0.000000e+00> : vector<16x128xf32>
    %2 = tpu.matmul %0, %1, %cst {dimension_numbers = #tpu.dot_dimension_numbers<[1], [0], [0], [1], [0, 0, 1, 1], [], []>} : vector<16x32xf32>, vector<32x128xf32>, vector<16x128xf32> -> vector<16x128xf32>
    %c0_3 = arith.constant 0 : index
    %c0_4 = arith.constant 0 : index
    %3 = vector.load %arg4[%c0_3, %c0_4] : memref<1x128xf32, #tpu.memory_space<vmem>>, vector<1x128xf32>
    %4 = vector.broadcast %3 : vector<1x128xf32> to vector<16x128xf32>
    %5 = arith.addf %2, %4 : vector<16x128xf32>
    %c0_5 = arith.constant 0 : index
    %c0_6 = arith.constant 0 : index
    %6 = vector.load %arg5[%c0_5, %c0_6] : memref<128x32xf32, #tpu.memory_space<vmem>>, vector<128x32xf32>
    %cst_7 = arith.constant dense<0.000000e+00> : vector<16x32xf32>
    %7 = tpu.matmul %5, %6, %cst_7 {dimension_numbers = #tpu.dot_dimension_numbers<[1], [0], [0], [1], [0, 0, 1, 1], [], []>} : vector<16x128xf32>, vector<128x32xf32>, vector<16x32xf32> -> vector<16x32xf32>
    %c0_8 = arith.constant 0 : index
    %c0_9 = arith.constant 0 : index
    %8 = vector.load %arg6[%c0_8, %c0_9] : memref<1x32xf32, #tpu.memory_space<vmem>>, vector<1x32xf32>
    %9 = vector.broadcast %8 : vector<1x32xf32> to vector<16x32xf32>
    %10 = arith.addf %7, %9 : vector<16x32xf32>
    %c0_10 = arith.constant 0 : index
    %c0_11 = arith.constant 0 : index
    %11 = vector.load %arg7[%c0_10, %c0_11] : memref<16x32xf32, #tpu.memory_space<vmem>>, vector<16x32xf32>
    tpu.vector_store %arg7[%c0_10, %c0_11], %10 {strides = array<i32>} : memref<16x32xf32, #tpu.memory_space<vmem>>, vector<16x32xf32>,
    return
  }
  func.func @transform_0(%arg0: i32, %arg1: i32) -> (i32, i32) {
    %c0_i32 = arith.constant 0 : i32
    %c0_i32_0 = arith.constant 0 : i32
    return %arg0, %c0_i32 : i32, i32
  }
  func.func @transform_1(%arg0: i32, %arg1: i32) -> (i32, i32) {
    %c0_i32 = arith.constant 0 : i32
    %c0_i32_0 = arith.constant 0 : i32
    %c0_i32_1 = arith.constant 0 : i32
    return %c0_i32, %c0_i32_0 : i32, i32
  }
  func.func @transform_2(%arg0: i32, %arg1: i32) -> (i32, i32) {
    %c0_i32 = arith.constant 0 : i32
    %c0_i32_0 = arith.constant 0 : i32
    %c0_i32_1 = arith.constant 0 : i32
    return %c0_i32, %c0_i32_0 : i32, i32
  }
  func.func @transform_3(%arg0: i32, %arg1: i32) -> (i32, i32) {
    %c0_i32 = arith.constant 0 : i32
    %c0_i32_0 = arith.constant 0 : i32
    return %c0_i32, %arg1 : i32, i32
  }
  func.func @transform_4(%arg0: i32, %arg1: i32) -> (i32, i32) {
    %c0_i32 = arith.constant 0 : i32
    %c0_i32_0 = arith.constant 0 : i32
    return %c0_i32, %arg1 : i32, i32
  }
  func.func @transform_5(%arg0: i32, %arg1: i32) -> (i32, i32) {
    %c0_i32 = arith.constant 0 : i32
    return %arg0, %arg1 : i32, i32
  }
}

module attributes {stable_mosaic.version = 11 : i64} {
  func.func @_llora_kernel(%arg0: i32, %arg1: i32, %arg2: memref<16x32xf32, #tpu.memory_space<vmem>>, %arg3: memref<32x128xf32, #tpu.memory_space<vmem>>, %arg4: memref<1x128xf32, #tpu.memory_space<vmem>>, %arg5: memref<128x32xf32, #tpu.memory_space<vmem>>, %arg6: memref<1x32xf32, #tpu.memory_space<vmem>>, %arg7: memref<16x32xf32, #tpu.memory_space<vmem>>) attributes {dimension_semantics = [#tpu.dimension_semantics<parallel>, #tpu.dimension_semantics<parallel>], iteration_bounds = array<i64: 1, 1>, scalar_prefetch = 0 : i64, scratch_operands = 0 : i64, tpu.core_type = #tpu.core_type<tc>, window_params = [{transform_indices = @transform_0, window_bounds = array<i64: 16, 32>}, {pipeline_mode = #tpu.pipeline_mode<synchronous>, transform_indices = @transform_1, window_bounds = array<i64: 32, 128>}, {pipeline_mode = #tpu.pipeline_mode<synchronous>, transform_indices = @transform_2, window_bounds = array<i64: 1, 128>}, {transform_indices = @transform_3, window_bounds = array<i64: 128, 32>}, {transform_indices = @transform_4, window_bounds = array<i64: 1, 32>}, {transform_indices = @transform_5, window_bounds = array<i64: 16, 32>}]} {
    %c0 = arith.constant 0 : index
    %c0_0 = arith.constant 0 : index
    %0 = vector.load %arg2[%c0, %c0_0] : memref<16x32xf32, #tpu.memory_space<vmem>>, vector<16x32xf32>
    %c0_1 = arith.constant 0 : index
    %c0_2 = arith.constant 0 : index
    %1 = vector.load %arg3[%c0_1, %c0_2] : memref<32x128xf32, #tpu.memory_space<vmem>>, vector<32x128xf32>
    %cst = arith.constant dense<0.000000e+00> : vector<16x128xf32>
    %2 = tpu.matmul %0, %1, %cst {dimension_numbers = #tpu.dot_dimension_numbers<[1], [0], [0], [1], [0, 0, 1, 1], [], []>} : vector<16x32xf32>, vector<32x128xf32>, vector<16x128xf32> -> vector<16x128xf32>
    %c0_3 = arith.constant 0 : index
    %c0_4 = arith.constant 0 : index
    %3 = vector.load %arg4[%c0_3, %c0_4] : memref<1x128xf32, #tpu.memory_space<vmem>>, vector<1x128xf32>
    %4 = vector.broadcast %3 : vector<1x128xf32> to vector<16x128xf32>
    %5 = arith.addf %2, %4 : vector<16x128xf32>
    %c0_5 = arith.constant 0 : index
    %c0_6 = arith.constant 0 : index
    %6 = vector.load %arg5[%c0_5, %c0_6] : memref<128x32xf32, #tpu.memory_space<vmem>>, vector<128x32xf32>
    %cst_7 = arith.constant dense<0.000000e+00> : vector<16x32xf32>
    %7 = tpu.matmul %5, %6, %cst_7 {dimension_numbers = #tpu.dot_dimension_numbers<[1], [0], [0], [1], [0, 0, 1, 1], [], []>} : vector<16x128xf32>, vector<128x32xf32>, vector<16x32xf32> -> vector<16x32xf32>
    %c0_8 = arith.constant 0 : index
    %c0_9 = arith.constant 0 : index
    %8 = vector.load %arg6[%c0_8, %c0_9] : memref<1x32xf32, #tpu.memory_space<vmem>>, vector<1x32xf32>
    %9 = vector.broadcast %8 : vector<1x32xf32> to vector<16x32xf32>
    %10 = arith.addf %7, %9 : vector<16x32xf32>
    %c0_10 = arith.constant 0 : index
    %c0_11 = arith.constant 0 : index
    %11 = vector.load %arg7[%c0_10, %c0_11] : memref<16x32xf32, #tpu.memory_space<vmem>>, vector<16x32xf32>
    tpu.vector_store %arg7[%c0_10, %c0_11], %10 {strides = array<i32>} : memref<16x32xf32, #tpu.memory_space<vmem>>, vector<16x32xf32>,
    return
  }
  func.func @transform_0(%arg0: i32, %arg1: i32) -> (i32, i32) {
    %c0_i32 = arith.constant 0 : i32
    %c0_i32_0 = arith.constant 0 : i32
    return %arg0, %c0_i32 : i32, i32
  }
  func.func @transform_1(%arg0: i32, %arg1: i32) -> (i32, i32) {
    %c0_i32 = arith.constant 0 : i32
    %c0_i32_0 = arith.constant 0 : i32
    %c0_i32_1 = arith.constant 0 : i32
    return %c0_i32, %c0_i32_0 : i32, i32
  }
  func.func @transform_2(%arg0: i32, %arg1: i32) -> (i32, i32) {
    %c0_i32 = arith.constant 0 : i32
    %c0_i32_0 = arith.constant 0 : i32
    %c0_i32_1 = arith.constant 0 : i32
    return %c0_i32, %c0_i32_0 : i32, i32
  }
  func.func @transform_3(%arg0: i32, %arg1: i32) -> (i32, i32) {
    %c0_i32 = arith.constant 0 : i32
    %c0_i32_0 = arith.constant 0 : i32
    return %c0_i32, %arg1 : i32, i32
  }
  func.func @transform_4(%arg0: i32, %arg1: i32) -> (i32, i32) {
    %c0_i32 = arith.constant 0 : i32
    %c0_i32_0 = arith.constant 0 : i32
    return %c0_i32, %arg1 : i32, i32
  }
  func.func @transform_5(%arg0: i32, %arg1: i32) -> (i32, i32) {
    %c0_i32 = arith.constant 0 : i32
    return %arg0, %arg1 : i32, i32
  }
}

</mosaic_0001>

<llo_original>
// kernel: tpu_custom_call.1
$region0: #{tpu_custom_call.1}
  #allocation0 [shape = 'u32[]', space=smem, size = 0x4, offset = 0x4, fixed_abs, tag = 'smem constant byte address 0x4 - core index']
  #allocation1 [shape = 'u32[144,128]{1,0:T(1,128)}', space=vmem, size = 0x12000, scoped, tag = 'internal scratch']
  %s0 = inlined_call_operand.vmem [shape: f32[16,32], index: 0, kind: input, shape index: {}]
  %s1 = inlined_call_operand.vmem [shape: f32[32,128], index: 1, kind: input, shape index: {}]
  %s2 = inlined_call_operand.vmem [shape: f32[1,128], index: 2, kind: input, shape index: {}]
  %s3 = inlined_call_operand.vmem [shape: f32[128,32], index: 3, kind: input, shape index: {}]
  %s4 = inlined_call_operand.vmem [shape: f32[1,32], index: 4, kind: input, shape index: {}]
  %s5 = inlined_call_operand.hbm [shape: f32[16,32], index: 5, kind: output, shape index: {}]
  %s6 = sld [smem:[#allocation0]]
  $region30: #{tpu_custom_call.1} parent=0
    _
  %s8 = ssub.s32 1, %s6
  %s9 = scalar_select 0, %s8, %s6
  $region1: #{tpu_custom_call.1} parent=0
    #allocation2 [shape = 'u8[8192]{0}', space=vmem, size = 0x2000, scoped, tag = 'output window, operand 0, single buffered']
    #allocation3 [shape = 's32[1]{0}', space=sflag, size = 0x4, scoped, tag = 'scoped memory for tpu_custom_call.1']
    %10 = vsyncpa [#allocation3], 0
    // Predicated region
    $region2: #{tpu_custom_call.1} parent=1 // pred_check
      _
    $region3: #{tpu_custom_call.1} parent=1 // pred_check_branch
      %12 = sbr.rel (0) target = $region5
    $region4: #{tpu_custom_call.1} parent=1 // pred_region
      _
    $region5: #{tpu_custom_call.1} parent=1 // pred_fallthru
      _
    // Predicated region
    $region6: #{tpu_custom_call.1} parent=1 // pred_check
      _
    $region7: #{tpu_custom_call.1} parent=1 // pred_check_branch
      %14 = sbr.rel (0) target = $region9
    $region8: #{tpu_custom_call.1} parent=1 // pred_region
      _
    $region9: #{tpu_custom_call.1} parent=1 // pred_fallthru
      _
    // Predicated region
    $region10: #{tpu_custom_call.1} parent=1 // pred_check
      _
    $region11: #{tpu_custom_call.1} parent=1 // pred_check_branch
      %16 = sbr.rel (0) target = $region13
    $region12: #{tpu_custom_call.1} parent=1 // pred_region
      _
    $region13: #{tpu_custom_call.1} parent=1 // pred_fallthru
      _
    // Predicated region
    $region14: #{tpu_custom_call.1} parent=1 // pred_check
      _
    $region15: #{tpu_custom_call.1} parent=1 // pred_check_branch
      %18 = sbr.rel (0) target = $region17
    $region16: #{tpu_custom_call.1} parent=1 // pred_region
      _
    $region17: #{tpu_custom_call.1} parent=1 // pred_fallthru
      _
    // Predicated region
    $region18: #{tpu_custom_call.1} parent=1 // pred_check
      _
    $region19: #{tpu_custom_call.1} parent=1 // pred_check_branch
      %20 = sbr.rel (0) target = $region21
    $region20: #{tpu_custom_call.1} parent=1 // pred_region
      _
    $region21: #{tpu_custom_call.1} parent=1 // pred_fallthru
      _
    %v21 = vld [vmem:[%s0] sm:$0xff]
    %v22 = vld [vmem:[%s0 + $0x8] sm:$0xff]
    %v23 = vld [vmem:[%s1] sm:$0xff]
    %v24 = vld [vmem:[%s1 + $0x8] sm:$0xff]
    %v25 = vld [vmem:[%s1 + $0x10] sm:$0xff]
    %v26 = vld [vmem:[%s1 + $0x18] sm:$0xff]
    %v27 = vld [vmem:[%s2] sm:$0x1]
    %v29 = vlaneseq
    %v30 = vshrl.u32 %v29, 7
    %v31 = vsub.s32 0, %v30
    %v32 = vrot.slane %v27, %v31
    %vm34 = vcmask 261120
    %v36 = vsel %vm34, %v21, 0
    %v39 = vsel %vm34, %v22, 0
    %41 = vmatprep.subr.mxu0 0.0
    %42 = vmatpush1.msra.mxu0 %v23
    %43 = vmatprep.subr.mxu0 0.0
    %44 = vmatpush1.msra.mxu0 %v24
    %45 = vmatprep.subr.mxu0 0.0
    %46 = vmatpush1.msra.mxu0 %v25
    %47 = vmatprep.subr.mxu0 0.0
    %48 = vmatpush1.msra.mxu0 %v26
    %49 = vmatprep.subr.mxu0 0.0
    %50 = vmatpush1.msra.mxu0 0.0
    %51 = vmatprep.subr.mxu0 0.0
    %52 = vmatpush1.msra.mxu0 0.0
    %53 = vmatprep.subr.mxu0 0.0
    %54 = vmatpush1.msra.mxu0 0.0
    %55 = vmatprep.subr.mxu0 0.0
    %56 = vmatpush1.msra.mxu0 0.0
    %57 = vmatprep.subr.mxu0 0.0
    %58 = vmatpush1.msra.mxu0 0.0
    %59 = vmatprep.subr.mxu0 0.0
    %60 = vmatpush1.msra.mxu0 0.0
    %61 = vmatprep.subr.mxu0 0.0
    %62 = vmatpush1.msra.mxu0 0.0
    %63 = vmatprep.subr.mxu0 0.0
    %64 = vmatpush1.msra.mxu0 0.0
    %65 = vmatprep.subr.mxu0 0.0
    %66 = vmatpush1.msra.mxu0 0.0
    %67 = vmatprep.subr.mxu0 0.0
    %68 = vmatpush1.msra.mxu0 0.0
    %69 = vmatprep.subr.mxu0 0.0
    %70 = vmatpush1.msra.mxu0 0.0
    %71 = vmatprep.subr.mxu0 0.0
    %72 = vmatpush1.msra.mxu0 0.0
    %73 = vmatprep.subr.mxu0 0.0
    %74 = vmatpush1.msra.mxu0 0.0
    %75 = vmatprep.subr.mxu0 0.0
    %76 = vmatpush1.msra.mxu0 0.0
    %77 = vmatprep.subr.mxu0 0.0
    %78 = vmatpush1.msra.mxu0 0.0
    %79 = vmatprep.subr.mxu0 0.0
    %80 = vmatpush1.msra.mxu0 0.0
    %81 = vmatprep.subr.mxu0 0.0
    %82 = vmatpush1.msra.mxu0 0.0
    %83 = vmatprep.subr.mxu0 0.0
    %84 = vmatpush1.msra.mxu0 0.0
    %85 = vmatprep.subr.mxu0 0.0
    %86 = vmatpush1.msra.mxu0 0.0
    %87 = vmatprep.subr.mxu0 0.0
    %88 = vmatpush1.msra.mxu0 0.0
    %89 = vmatprep.subr.mxu0 0.0
    %90 = vmatpush1.msra.mxu0 0.0
    %91 = vmatprep.subr.mxu0 0.0
    %92 = vmatpush1.msra.mxu0 0.0
    %93 = vmatprep.subr.mxu0 0.0
    %94 = vmatpush1.msra.mxu0 0.0
    %95 = vmatprep.subr.mxu0 0.0
    %96 = vmatpush1.msra.mxu0 0.0
    %97 = vmatprep.subr.mxu0 0.0
    %98 = vmatpush1.msra.mxu0 0.0
    %99 = vmatprep.subr.mxu0 0.0
    %100 = vmatpush1.msra.mxu0 0.0
    %101 = vmatprep.subr.mxu0 0.0
    %102 = vmatpush1.msra.mxu0 0.0
    %103 = vmatprep.subr.mxu0 0.0
    %104 = vmatpush1.msra.mxu0 0.0
    %105 = vmatprep.mubr.f32.mxu0 0.0
    %106 = vmatmul.mubr.f32.gmra.mrb[0].mxu0 %v36
    %v107 = vpop.f32.mrb[0].mxu0
    %v108 = vadd.f32 %v32, %v107
    %v109 = vpop.f32.mrb[0].mxu0
    %110 = vmatprep.mubr.f32.mxu0 0.0
    %111 = vmatmul.mubr.f32.gmra.mrb[0].mxu0 %v39
    %v112 = vpop.f32.mrb[0].mxu0
    %v113 = vadd.f32 %v32, %v112
    %v114 = vpop.f32.mrb[0].mxu0
    %115 = vdwg.mxu0
    %v116 = vld [vmem:[%s3] sm:$0xff]
    %v117 = vld [vmem:[%s3 + $0x8] sm:$0xff]
    %v118 = vld [vmem:[%s3 + $0x10] sm:$0xff]
    %v119 = vld [vmem:[%s3 + $0x18] sm:$0xff]
    %v120 = vld [vmem:[%s3 + $0x20] sm:$0xff]
    %v121 = vld [vmem:[%s3 + $0x28] sm:$0xff]
    %v122 = vld [vmem:[%s3 + $0x30] sm:$0xff]
    %v123 = vld [vmem:[%s3 + $0x38] sm:$0xff]
    %v124 = vld [vmem:[%s3 + $0x40] sm:$0xff]
    %v125 = vld [vmem:[%s3 + $0x48] sm:$0xff]
    %v126 = vld [vmem:[%s3 + $0x50] sm:$0xff]
    %v127 = vld [vmem:[%s3 + $0x58] sm:$0xff]
    %v128 = vld [vmem:[%s3 + $0x60] sm:$0xff]
    %v129 = vld [vmem:[%s3 + $0x68] sm:$0xff]
    %v130 = vld [vmem:[%s3 + $0x70] sm:$0xff]
    %v131 = vld [vmem:[%s3 + $0x78] sm:$0xff]
    %v132 = vld [vmem:[%s4] sm:$0x1]
    %v134 = vlaneseq
    %v135 = vshrl.u32 %v134, 7
    %v136 = vsub.s32 0, %v135
    %v137 = vrot.slane %v132, %v136
    %139 = vmatprep.subr.mxu0 0.0
    %140 = vmatpush1.msra.mxu0 %v116
    %141 = vmatprep.subr.mxu0 0.0
    %142 = vmatpush1.msra.mxu0 %v117
    %143 = vmatprep.subr.mxu0 0.0
    %144 = vmatpush1.msra.mxu0 %v118
    %145 = vmatprep.subr.mxu0 0.0
    %146 = vmatpush1.msra.mxu0 %v119
    %147 = vmatprep.subr.mxu0 0.0
    %148 = vmatpush1.msra.mxu0 %v120
    %149 = vmatprep.subr.mxu0 0.0
    %150 = vmatpush1.msra.mxu0 %v121
    %151 = vmatprep.subr.mxu0 0.0
    %152 = vmatpush1.msra.mxu0 %v122
    %153 = vmatprep.subr.mxu0 0.0
    %154 = vmatpush1.msra.mxu0 %v123
    %155 = vmatprep.subr.mxu0 0.0
    %156 = vmatpush1.msra.mxu0 %v124
    %157 = vmatprep.subr.mxu0 0.0
    %158 = vmatpush1.msra.mxu0 %v125
    %159 = vmatprep.subr.mxu0 0.0
    %160 = vmatpush1.msra.mxu0 %v126
    %161 = vmatprep.subr.mxu0 0.0
    %162 = vmatpush1.msra.mxu0 %v127
    %163 = vmatprep.subr.mxu0 0.0
    %164 = vmatpush1.msra.mxu0 %v128
    %165 = vmatprep.subr.mxu0 0.0
    %166 = vmatpush1.msra.mxu0 %v129
    %167 = vmatprep.subr.mxu0 0.0
    %168 = vmatpush1.msra.mxu0 %v130
    %169 = vmatprep.subr.mxu0 0.0
    %170 = vmatpush1.msra.mxu0 %v131
    %171 = vmatprep.subr.mxu0 0.0
    %172 = vmatpush1.msra.mxu0 0.0
    %173 = vmatprep.subr.mxu0 0.0
    %174 = vmatpush1.msra.mxu0 0.0
    %175 = vmatprep.subr.mxu0 0.0
    %176 = vmatpush1.msra.mxu0 0.0
    %177 = vmatprep.subr.mxu0 0.0
    %178 = vmatpush1.msra.mxu0 0.0
    %179 = vmatprep.subr.mxu0 0.0
    %180 = vmatpush1.msra.mxu0 0.0
    %181 = vmatprep.subr.mxu0 0.0
    %182 = vmatpush1.msra.mxu0 0.0
    %183 = vmatprep.subr.mxu0 0.0
    %184 = vmatpush1.msra.mxu0 0.0
    %185 = vmatprep.subr.mxu0 0.0
    %186 = vmatpush1.msra.mxu0 0.0
    %187 = vmatprep.subr.mxu0 0.0
    %188 = vmatpush1.msra.mxu0 0.0
    %189 = vmatprep.subr.mxu0 0.0
    %190 = vmatpush1.msra.mxu0 0.0
    %191 = vmatprep.subr.mxu0 0.0
    %192 = vmatpush1.msra.mxu0 0.0
    %193 = vmatprep.subr.mxu0 0.0
    %194 = vmatpush1.msra.mxu0 0.0
    %195 = vmatprep.subr.mxu0 0.0
    %196 = vmatpush1.msra.mxu0 0.0
    %197 = vmatprep.subr.mxu0 0.0
    %198 = vmatpush1.msra.mxu0 0.0
    %199 = vmatprep.subr.mxu0 0.0
    %200 = vmatpush1.msra.mxu0 0.0
    %201 = vmatprep.subr.mxu0 0.0
    %202 = vmatpush1.msra.mxu0 0.0
    %203 = vmatprep.mubr.f32.mxu0 0.0
    %204 = vmatmul.mubr.f32.gmra.mrb[0].mxu0 %v108
    %v205 = vpop.f32.mrb[0].mxu0
    %v206 = vadd.f32 %v137, %v205
    %v207 = vpop.f32.mrb[0].mxu0
    %208 = vmatprep.mubr.f32.mxu0 0.0
    %209 = vmatmul.mubr.f32.gmra.mrb[0].mxu0 %v113
    %v210 = vpop.f32.mrb[0].mxu0
    %v211 = vadd.f32 %v137, %v210
    %v212 = vpop.f32.mrb[0].mxu0
    %213 = vdwg.mxu0
    %214 = vst.msk [vmem:[#allocation2] sm:$0xff] %vm34, %v206
    %215 = vst.msk [vmem:[#allocation2 + $0x8] sm:$0xff] %vm34, %v211
    // Predicated region
    $region22: #{tpu_custom_call.1} parent=1 // pred_check
      _
    $region23: #{tpu_custom_call.1} parent=1 // pred_check_branch
      %217 = sbr.rel (0) target = $region25
    $region24: #{tpu_custom_call.1} parent=1 // pred_region
      %s219 = ssub.s32 256, 256
      %220 = vsyncadd [#allocation3], %s219
      %s221 = sshll.u32 [#allocation2], 4
      %s222 = int_to_ptr.vmem [resolvable:$true] %s221
      %227 = dma.vmem_to_hbm [thread:$0]  %s222, 256, %s5, [#allocation3], 128, 128, 8
    $region25: #{tpu_custom_call.1} parent=1 // pred_fallthru
      _
    // Predicated region
    $region26: #{tpu_custom_call.1} parent=1 // pred_check
      _
    $region27: #{tpu_custom_call.1} parent=1 // pred_check_branch
      %229 = sbr.rel (0) target = $region29
    $region28: #{tpu_custom_call.1} parent=1 // pred_region
      %230 = dma.done [#allocation3], 256
    $region29: #{tpu_custom_call.1} parent=1 // pred_fallthru
      _
    %231 = vsyncpa [#allocation3], 1

// kernel: tpu_custom_call.1
$region0: #{tpu_custom_call.1}
  #allocation0 [shape = 'u32[]', space=smem, size = 0x4, offset = 0x4, fixed_abs, tag = 'smem constant byte address 0x4 - core index']
  #allocation1 [shape = 'u32[144,128]{1,0:T(1,128)}', space=vmem, size = 0x12000, scoped, tag = 'internal scratch']
  %s0 = inlined_call_operand.vmem [shape: f32[16,32], index: 0, kind: input, shape index: {}]
  %s1 = inlined_call_operand.vmem [shape: f32[32,128], index: 1, kind: input, shape index: {}]
  %s2 = inlined_call_operand.vmem [shape: f32[1,128], index: 2, kind: input, shape index: {}]
  %s3 = inlined_call_operand.vmem [shape: f32[128,32], index: 3, kind: input, shape index: {}]
  %s4 = inlined_call_operand.vmem [shape: f32[1,32], index: 4, kind: input, shape index: {}]
  %s5 = inlined_call_operand.hbm [shape: f32[16,32], index: 5, kind: output, shape index: {}]
  %s6 = sld [smem:[#allocation0]]
  $region30: #{tpu_custom_call.1} parent=0
    _
  %s8 = ssub.s32 1, %s6
  %s9 = scalar_select 0, %s8, %s6
  $region1: #{tpu_custom_call.1} parent=0
    #allocation2 [shape = 'u8[8192]{0}', space=vmem, size = 0x2000, scoped, tag = 'output window, operand 0, single buffered']
    #allocation3 [shape = 's32[1]{0}', space=sflag, size = 0x4, scoped, tag = 'scoped memory for tpu_custom_call.1']
    %10 = vsyncpa [#allocation3], 0
    // Predicated region
    $region2: #{tpu_custom_call.1} parent=1 // pred_check
      _
    $region3: #{tpu_custom_call.1} parent=1 // pred_check_branch
      %12 = sbr.rel (0) target = $region5
    $region4: #{tpu_custom_call.1} parent=1 // pred_region
      _
    $region5: #{tpu_custom_call.1} parent=1 // pred_fallthru
      _
    // Predicated region
    $region6: #{tpu_custom_call.1} parent=1 // pred_check
      _
    $region7: #{tpu_custom_call.1} parent=1 // pred_check_branch
      %14 = sbr.rel (0) target = $region9
    $region8: #{tpu_custom_call.1} parent=1 // pred_region
      _
    $region9: #{tpu_custom_call.1} parent=1 // pred_fallthru
      _
    // Predicated region
    $region10: #{tpu_custom_call.1} parent=1 // pred_check
      _
    $region11: #{tpu_custom_call.1} parent=1 // pred_check_branch
      %16 = sbr.rel (0) target = $region13
    $region12: #{tpu_custom_call.1} parent=1 // pred_region
      _
    $region13: #{tpu_custom_call.1} parent=1 // pred_fallthru
      _
    // Predicated region
    $region14: #{tpu_custom_call.1} parent=1 // pred_check
      _
    $region15: #{tpu_custom_call.1} parent=1 // pred_check_branch
      %18 = sbr.rel (0) target = $region17
    $region16: #{tpu_custom_call.1} parent=1 // pred_region
      _
    $region17: #{tpu_custom_call.1} parent=1 // pred_fallthru
      _
    // Predicated region
    $region18: #{tpu_custom_call.1} parent=1 // pred_check
      _
    $region19: #{tpu_custom_call.1} parent=1 // pred_check_branch
      %20 = sbr.rel (0) target = $region21
    $region20: #{tpu_custom_call.1} parent=1 // pred_region
      _
    $region21: #{tpu_custom_call.1} parent=1 // pred_fallthru
      _
    %v21 = vld [vmem:[%s0] sm:$0xff]
    %v22 = vld [vmem:[%s0 + $0x8] sm:$0xff]
    %v23 = vld [vmem:[%s1] sm:$0xff]
    %v24 = vld [vmem:[%s1 + $0x8] sm:$0xff]
    %v25 = vld [vmem:[%s1 + $0x10] sm:$0xff]
    %v26 = vld [vmem:[%s1 + $0x18] sm:$0xff]
    %v27 = vld [vmem:[%s2] sm:$0x1]
    %v29 = vlaneseq
    %v30 = vshrl.u32 %v29, 7
    %v31 = vsub.s32 0, %v30
    %v32 = vrot.slane %v27, %v31
    %vm34 = vcmask 261120
    %v36 = vsel %vm34, %v21, 0
    %v39 = vsel %vm34, %v22, 0
    %41 = vmatprep.subr.mxu0 0.0
    %42 = vmatpush1.msra.mxu0 %v23
    %43 = vmatprep.subr.mxu0 0.0
    %44 = vmatpush1.msra.mxu0 %v24
    %45 = vmatprep.subr.mxu0 0.0
    %46 = vmatpush1.msra.mxu0 %v25
    %47 = vmatprep.subr.mxu0 0.0
    %48 = vmatpush1.msra.mxu0 %v26
    %49 = vmatprep.subr.mxu0 0.0
    %50 = vmatpush1.msra.mxu0 0.0
    %51 = vmatprep.subr.mxu0 0.0
    %52 = vmatpush1.msra.mxu0 0.0
    %53 = vmatprep.subr.mxu0 0.0
    %54 = vmatpush1.msra.mxu0 0.0
    %55 = vmatprep.subr.mxu0 0.0
    %56 = vmatpush1.msra.mxu0 0.0
    %57 = vmatprep.subr.mxu0 0.0
    %58 = vmatpush1.msra.mxu0 0.0
    %59 = vmatprep.subr.mxu0 0.0
    %60 = vmatpush1.msra.mxu0 0.0
    %61 = vmatprep.subr.mxu0 0.0
    %62 = vmatpush1.msra.mxu0 0.0
    %63 = vmatprep.subr.mxu0 0.0
    %64 = vmatpush1.msra.mxu0 0.0
    %65 = vmatprep.subr.mxu0 0.0
    %66 = vmatpush1.msra.mxu0 0.0
    %67 = vmatprep.subr.mxu0 0.0
    %68 = vmatpush1.msra.mxu0 0.0
    %69 = vmatprep.subr.mxu0 0.0
    %70 = vmatpush1.msra.mxu0 0.0
    %71 = vmatprep.subr.mxu0 0.0
    %72 = vmatpush1.msra.mxu0 0.0
    %73 = vmatprep.subr.mxu0 0.0
    %74 = vmatpush1.msra.mxu0 0.0
    %75 = vmatprep.subr.mxu0 0.0
    %76 = vmatpush1.msra.mxu0 0.0
    %77 = vmatprep.subr.mxu0 0.0
    %78 = vmatpush1.msra.mxu0 0.0
    %79 = vmatprep.subr.mxu0 0.0
    %80 = vmatpush1.msra.mxu0 0.0
    %81 = vmatprep.subr.mxu0 0.0
    %82 = vmatpush1.msra.mxu0 0.0
    %83 = vmatprep.subr.mxu0 0.0
    %84 = vmatpush1.msra.mxu0 0.0
    %85 = vmatprep.subr.mxu0 0.0
    %86 = vmatpush1.msra.mxu0 0.0
    %87 = vmatprep.subr.mxu0 0.0
    %88 = vmatpush1.msra.mxu0 0.0
    %89 = vmatprep.subr.mxu0 0.0
    %90 = vmatpush1.msra.mxu0 0.0
    %91 = vmatprep.subr.mxu0 0.0
    %92 = vmatpush1.msra.mxu0 0.0
    %93 = vmatprep.subr.mxu0 0.0
    %94 = vmatpush1.msra.mxu0 0.0
    %95 = vmatprep.subr.mxu0 0.0
    %96 = vmatpush1.msra.mxu0 0.0
    %97 = vmatprep.subr.mxu0 0.0
    %98 = vmatpush1.msra.mxu0 0.0
    %99 = vmatprep.subr.mxu0 0.0
    %100 = vmatpush1.msra.mxu0 0.0
    %101 = vmatprep.subr.mxu0 0.0
    %102 = vmatpush1.msra.mxu0 0.0
    %103 = vmatprep.subr.mxu0 0.0
    %104 = vmatpush1.msra.mxu0 0.0
    %105 = vmatprep.mubr.f32.mxu0 0.0
    %106 = vmatmul.mubr.f32.gmra.mrb[0].mxu0 %v36
    %v107 = vpop.f32.mrb[0].mxu0
    %v108 = vadd.f32 %v32, %v107
    %v109 = vpop.f32.mrb[0].mxu0
    %110 = vmatprep.mubr.f32.mxu0 0.0
    %111 = vmatmul.mubr.f32.gmra.mrb[0].mxu0 %v39
    %v112 = vpop.f32.mrb[0].mxu0
    %v113 = vadd.f32 %v32, %v112
    %v114 = vpop.f32.mrb[0].mxu0
    %115 = vdwg.mxu0
    %v116 = vld [vmem:[%s3] sm:$0xff]
    %v117 = vld [vmem:[%s3 + $0x8] sm:$0xff]
    %v118 = vld [vmem:[%s3 + $0x10] sm:$0xff]
    %v119 = vld [vmem:[%s3 + $0x18] sm:$0xff]
    %v120 = vld [vmem:[%s3 + $0x20] sm:$0xff]
    %v121 = vld [vmem:[%s3 + $0x28] sm:$0xff]
    %v122 = vld [vmem:[%s3 + $0x30] sm:$0xff]
    %v123 = vld [vmem:[%s3 + $0x38] sm:$0xff]
    %v124 = vld [vmem:[%s3 + $0x40] sm:$0xff]
    %v125 = vld [vmem:[%s3 + $0x48] sm:$0xff]
    %v126 = vld [vmem:[%s3 + $0x50] sm:$0xff]
    %v127 = vld [vmem:[%s3 + $0x58] sm:$0xff]
    %v128 = vld [vmem:[%s3 + $0x60] sm:$0xff]
    %v129 = vld [vmem:[%s3 + $0x68] sm:$0xff]
    %v130 = vld [vmem:[%s3 + $0x70] sm:$0xff]
    %v131 = vld [vmem:[%s3 + $0x78] sm:$0xff]
    %v132 = vld [vmem:[%s4] sm:$0x1]
    %v134 = vlaneseq
    %v135 = vshrl.u32 %v134, 7
    %v136 = vsub.s32 0, %v135
    %v137 = vrot.slane %v132, %v136
    %139 = vmatprep.subr.mxu0 0.0
    %140 = vmatpush1.msra.mxu0 %v116
    %141 = vmatprep.subr.mxu0 0.0
    %142 = vmatpush1.msra.mxu0 %v117
    %143 = vmatprep.subr.mxu0 0.0
    %144 = vmatpush1.msra.mxu0 %v118
    %145 = vmatprep.subr.mxu0 0.0
    %146 = vmatpush1.msra.mxu0 %v119
    %147 = vmatprep.subr.mxu0 0.0
    %148 = vmatpush1.msra.mxu0 %v120
    %149 = vmatprep.subr.mxu0 0.0
    %150 = vmatpush1.msra.mxu0 %v121
    %151 = vmatprep.subr.mxu0 0.0
    %152 = vmatpush1.msra.mxu0 %v122
    %153 = vmatprep.subr.mxu0 0.0
    %154 = vmatpush1.msra.mxu0 %v123
    %155 = vmatprep.subr.mxu0 0.0
    %156 = vmatpush1.msra.mxu0 %v124
    %157 = vmatprep.subr.mxu0 0.0
    %158 = vmatpush1.msra.mxu0 %v125
    %159 = vmatprep.subr.mxu0 0.0
    %160 = vmatpush1.msra.mxu0 %v126
    %161 = vmatprep.subr.mxu0 0.0
    %162 = vmatpush1.msra.mxu0 %v127
    %163 = vmatprep.subr.mxu0 0.0
    %164 = vmatpush1.msra.mxu0 %v128
    %165 = vmatprep.subr.mxu0 0.0
    %166 = vmatpush1.msra.mxu0 %v129
    %167 = vmatprep.subr.mxu0 0.0
    %168 = vmatpush1.msra.mxu0 %v130
    %169 = vmatprep.subr.mxu0 0.0
    %170 = vmatpush1.msra.mxu0 %v131
    %171 = vmatprep.subr.mxu0 0.0
    %172 = vmatpush1.msra.mxu0 0.0
    %173 = vmatprep.subr.mxu0 0.0
    %174 = vmatpush1.msra.mxu0 0.0
    %175 = vmatprep.subr.mxu0 0.0
    %176 = vmatpush1.msra.mxu0 0.0
    %177 = vmatprep.subr.mxu0 0.0
    %178 = vmatpush1.msra.mxu0 0.0
    %179 = vmatprep.subr.mxu0 0.0
    %180 = vmatpush1.msra.mxu0 0.0
    %181 = vmatprep.subr.mxu0 0.0
    %182 = vmatpush1.msra.mxu0 0.0
    %183 = vmatprep.subr.mxu0 0.0
    %184 = vmatpush1.msra.mxu0 0.0
    %185 = vmatprep.subr.mxu0 0.0
    %186 = vmatpush1.msra.mxu0 0.0
    %187 = vmatprep.subr.mxu0 0.0
    %188 = vmatpush1.msra.mxu0 0.0
    %189 = vmatprep.subr.mxu0 0.0
    %190 = vmatpush1.msra.mxu0 0.0
    %191 = vmatprep.subr.mxu0 0.0
    %192 = vmatpush1.msra.mxu0 0.0
    %193 = vmatprep.subr.mxu0 0.0
    %194 = vmatpush1.msra.mxu0 0.0
    %195 = vmatprep.subr.mxu0 0.0
    %196 = vmatpush1.msra.mxu0 0.0
    %197 = vmatprep.subr.mxu0 0.0
    %198 = vmatpush1.msra.mxu0 0.0
    %199 = vmatprep.subr.mxu0 0.0
    %200 = vmatpush1.msra.mxu0 0.0
    %201 = vmatprep.subr.mxu0 0.0
    %202 = vmatpush1.msra.mxu0 0.0
    %203 = vmatprep.mubr.f32.mxu0 0.0
    %204 = vmatmul.mubr.f32.gmra.mrb[0].mxu0 %v108
    %v205 = vpop.f32.mrb[0].mxu0
    %v206 = vadd.f32 %v137, %v205
    %v207 = vpop.f32.mrb[0].mxu0
    %208 = vmatprep.mubr.f32.mxu0 0.0
    %209 = vmatmul.mubr.f32.gmra.mrb[0].mxu0 %v113
    %v210 = vpop.f32.mrb[0].mxu0
    %v211 = vadd.f32 %v137, %v210
    %v212 = vpop.f32.mrb[0].mxu0
    %213 = vdwg.mxu0
    %214 = vst.msk [vmem:[#allocation2] sm:$0xff] %vm34, %v206
    %215 = vst.msk [vmem:[#allocation2 + $0x8] sm:$0xff] %vm34, %v211
    // Predicated region
    $region22: #{tpu_custom_call.1} parent=1 // pred_check
      _
    $region23: #{tpu_custom_call.1} parent=1 // pred_check_branch
      %217 = sbr.rel (0) target = $region25
    $region24: #{tpu_custom_call.1} parent=1 // pred_region
      %s219 = ssub.s32 256, 256
      %220 = vsyncadd [#allocation3], %s219
      %s221 = sshll.u32 [#allocation2], 4
      %s222 = int_to_ptr.vmem [resolvable:$true] %s221
      %227 = dma.vmem_to_hbm [thread:$0]  %s222, 256, %s5, [#allocation3], 128, 128, 8
    $region25: #{tpu_custom_call.1} parent=1 // pred_fallthru
      _
    // Predicated region
    $region26: #{tpu_custom_call.1} parent=1 // pred_check
      _
    $region27: #{tpu_custom_call.1} parent=1 // pred_check_branch
      %229 = sbr.rel (0) target = $region29
    $region28: #{tpu_custom_call.1} parent=1 // pred_region
      %230 = dma.done [#allocation3], 256
    $region29: #{tpu_custom_call.1} parent=1 // pred_fallthru
      _
    %231 = vsyncpa [#allocation3], 1

</llo_original>
